<compile_context>
chip_gen: v7x
topology: tpu7x:2x2x1
jax: 0.10.0
libtpu: 0.0.40
codegen_flags: <defaults>
</compile_context>

<pallas_src>
import functools

import jax
import jax.numpy as jnp
from jax import lax
from jax.experimental import pallas as pl
from jax.experimental.pallas import tpu as pltpu


def _round_up(x, m):
    return ((x + m - 1) // m) * m


def _cdiv(a, b):
    return -(-a // b)


def _fused_critic_kernel(obs_ref, act_ref, w_ref, q_ref, x_s, *,
                         obs_dim, act_dim, d_in, din_pad, lanes,
                         o_w1, o_b1, o_w2, o_b2, o_w3t, o_b3):
    """One batch tile of the fused twin-Q MLP.

    obs_ref: [tb, obs_dim] f32     act_ref: [tb, act_dim] f32
    w_ref:   [rows, lanes] packed weight slab (resident across the grid)
    q_ref:   [2, tb] f32           (transposed, lane-dense output)
    x_s:     [tb, din_pad] VMEM scratch for the concatenated layer-1 input
    """
    wdt = w_ref.dtype
    f32 = jnp.float32

    # Concatenate obs/action into the padded layer-1 input entirely in VMEM
    # (no HBM round trip).  Padding lanes are rewritten every step so the
    # kernel is correct under megacore grid sharding (scratch is per-core).
    x_s[:, 0:obs_dim] = obs_ref[...].astype(wdt)
    x_s[:, obs_dim:d_in] = act_ref[...].astype(wdt)
    if din_pad > d_in:
        x_s[:, d_in:din_pad] = jnp.zeros((x_s.shape[0], din_pad - d_in), wdt)
    x = x_s[...]

    # Layer 1: [tb, din_pad] @ [din_pad, lanes]   (fused W1a | W1b)
    w1 = w_ref[o_w1:o_w1 + din_pad, :]
    b1 = w_ref[o_b1, :].astype(f32)
    h = jnp.dot(x, w1, preferred_element_type=f32) + b1
    h = jnp.maximum(h, 0.0).astype(wdt)

    # Layer 2: [tb, lanes] @ [lanes, lanes]       (block-diagonal W2)
    w2 = w_ref[o_w2:o_w2 + lanes, :]
    b2 = w_ref[o_b2, :].astype(f32)
    h = jnp.dot(h, w2, preferred_element_type=f32) + b2
    h = jnp.maximum(h, 0.0).astype(wdt)

    # Layer 3, produced directly in transposed (lane-dense) form:
    #   q_t[c, b] = sum_k W3t[c, k] * h[b, k]
    # i.e. an A @ B.T contraction (same shape class as attention scores), so
    # no vector transpose and the [2, tb] store is lane-dense.
    w3t = w_ref[o_w3t:o_w3t + 8, :]                                 # [8, lanes]
    qt = lax.dot_general(w3t, h, (((1,), (1,)), ((), ())),
                         preferred_element_type=f32)                # [8, tb]
    b3 = w_ref[o_b3:o_b3 + 2, 0:1].astype(f32)                      # [2, 1]
    q_ref[...] = qt[0:2, :] + b3


def critic_forward(obs, action, params, *, batch_tile=None,
                   weight_dtype=jnp.bfloat16, max_batch_tile=1024):
    """obs: [B, obs_dim], action: [B, action_dim] -> (q1 [B,1], q2 [B,1])."""
    obs = jnp.asarray(obs, jnp.float32)
    action = jnp.asarray(action, jnp.float32)
    B, obs_dim = obs.shape
    act_dim = action.shape[1]
    d_in = obs_dim + act_dim

    h = params["net1"]["l1"][0].shape[1]      # per-net hidden width (64)
    lanes = _round_up(2 * h, 128)             # fused hidden width (128)
    din_pad = _round_up(d_in, 8)              # sublane-aligned contraction dim

    # ---- pack all parameters into one (8,128)-aligned resident slab --------
    o_w1 = 0
    o_b1 = o_w1 + din_pad
    o_w2 = o_b1 + 8
    o_b2 = o_w2 + lanes
    o_w3t = o_b2 + 8                          # W3 stored TRANSPOSED (8 rows)
    o_b3 = o_w3t + 8
    rows = o_b3 + 8

    (w1a, b1a) = params["net1"]["l1"]
    (w2a, b2a) = params["net1"]["l2"]
    (w3a, b3a) = params["net1"]["l3"]
    (w1b, b1b) = params["net2"]["l1"]
    (w2b, b2b) = params["net2"]["l2"]
    (w3b, b3b) = params["net2"]["l3"]

    slab = jnp.zeros((rows, lanes), jnp.float32)
    slab = slab.at[o_w1:o_w1 + d_in, 0:2 * h].set(
        jnp.concatenate([w1a, w1b], axis=1))
    slab = slab.at[o_b1, 0:2 * h].set(
        jnp.concatenate([b1a.reshape(-1), b1b.reshape(-1)]))
    slab = slab.at[o_w2:o_w2 + h, 0:h].set(w2a)                      # block-diag
    slab = slab.at[o_w2 + h:o_w2 + 2 * h, h:2 * h].set(w2b)
    slab = slab.at[o_b2, 0:2 * h].set(
        jnp.concatenate([b2a.reshape(-1), b2b.reshape(-1)]))
    slab = slab.at[o_w3t, 0:h].set(w3a.reshape(-1))                  # row 0 -> q1
    slab = slab.at[o_w3t + 1, h:2 * h].set(w3b.reshape(-1))          # row 1 -> q2
    slab = slab.at[o_b3, 0].set(b3a.reshape(()))                     # b3 as column
    slab = slab.at[o_b3 + 1, 0].set(b3b.reshape(()))
    slab = slab.astype(weight_dtype)

    # ---- adaptive batch tiling ---------------------------------------------
    b8 = _round_up(max(B, 1), 8)
    if batch_tile is not None:
        tb = b8 if batch_tile >= b8 else _round_up(batch_tile, 128)
    elif b8 <= 256:
        tb = b8                                    # single small tile
    else:
        # >= 2 steps (megacore on v7x), tiles <= max_batch_tile, multiple of
        # 128 (required for the lane-dense transposed output block).
        n_tiles = max(2, _cdiv(b8, max_batch_tile))
        tb = min(_round_up(max_batch_tile, 128),
                 _round_up(_cdiv(b8, n_tiles), 128))
    b_pad = _round_up(b8, tb)

    if b_pad != B:          # only ragged batch sizes pay a small pad copy
        obs = jnp.pad(obs, ((0, b_pad - B), (0, 0)))
        action = jnp.pad(action, ((0, b_pad - B), (0, 0)))

    kernel = functools.partial(
        _fused_critic_kernel,
        obs_dim=obs_dim, act_dim=act_dim, d_in=d_in, din_pad=din_pad,
        lanes=lanes, o_w1=o_w1, o_b1=o_b1, o_w2=o_w2, o_b2=o_b2,
        o_w3t=o_w3t, o_b3=o_b3)

    qt = pl.pallas_call(
        kernel,
        out_shape=jax.ShapeDtypeStruct((2, b_pad), jnp.float32),
        grid_spec=pltpu.PrefetchScalarGridSpec(
            num_scalar_prefetch=0,
            grid=(b_pad // tb,),
            in_specs=[
                pl.BlockSpec((tb, obs_dim), lambda i: (i, 0)),   # obs tiled
                pl.BlockSpec((tb, act_dim), lambda i: (i, 0)),   # action tiled
                pl.BlockSpec((rows, lanes), lambda i: (0, 0)),   # slab resident
            ],
            out_specs=pl.BlockSpec((2, tb), lambda i: (0, i)),   # lane-dense
            scratch_shapes=[pltpu.VMEM((tb, din_pad), weight_dtype)],
        ),
        compiler_params=pltpu.CompilerParams(
            dimension_semantics=("parallel",),   # shard batch tiles across TCs
        ),
    )(obs, action, slab)

    q1 = qt[0, :B].reshape(B, 1)
    q2 = qt[1, :B].reshape(B, 1)
    return q1, q2


def init_critic_params(key, obs_dim, action_dim, hidden=64):
    """Deterministic synthetic init; weights stored as [in, out], bias [1, out]."""
    dims = [(obs_dim + action_dim, hidden), (hidden, hidden), (hidden, 1)]
    params = {}
    for net in ("net1", "net2"):
        layers = {}
        for li, (d_in, d_out) in enumerate(dims, start=1):
            key, kw, kb = jax.random.split(key, 3)
            bound = 1.0 / jnp.sqrt(d_in)          # mimic nn.Linear default init
            w = jax.random.uniform(kw, (d_in, d_out), jnp.float32, -bound, bound)
            b = jax.random.uniform(kb, (1, d_out), jnp.float32, -bound, bound)
            layers[f"l{li}"] = (w, b)
        params[net] = layers
    return params


def critic_reference(obs, action, params):
    """Pure-JAX reference of the PyTorch forward for verification."""
    x = jnp.concatenate([obs, action], axis=-1).astype(jnp.float32)

    def mlp(net):
        h = x
        for li, act in (("l1", True), ("l2", True), ("l3", False)):
            w, b = params[net][li]
            h = jnp.dot(h, w, precision=jax.lax.Precision.HIGHEST) + b
            if act:
                h = jnp.maximum(h, 0.0)
        return h

    return mlp("net1"), mlp("net2")


if __name__ == "__main__":
    obs_dim, action_dim, batch = 8, 4, 2

    key = jax.random.PRNGKey(0)
    key, k_obs, k_act, k_params = jax.random.split(key, 4)

    obs = jax.random.normal(k_obs, (batch, obs_dim), jnp.float32)
    action = jax.random.normal(k_act, (batch, action_dim), jnp.float32)
    params = init_critic_params(k_params, obs_dim, action_dim)

    r1, r2 = critic_reference(obs, action, params)

    # Default path: bf16 MXU operands, f32 accumulation (loose tolerance).
    q1, q2 = critic_forward(obs, action, params)
    q1 = jax.block_until_ready(q1)
    q2 = jax.block_until_ready(q2)
    assert q1.shape == (batch, 1) and q2.shape == (batch, 1)
    assert jnp.allclose(q1, r1, atol=1e-1, rtol=1e-1), "q1 mismatch (bf16)"
    assert jnp.allclose(q2, r2, atol=1e-1, rtol=1e-1), "q2 mismatch (bf16)"

    # Exact-parity mode: f32 weights/activations, tight tolerance.
    q1f, q2f = critic_forward(obs, action, params, weight_dtype=jnp.float32)
    jax.block_until_ready((q1f, q2f))
    assert jnp.allclose(q1f, r1, atol=1e-4), "q1 mismatch (f32)"
    assert jnp.allclose(q2f, r2, atol=1e-4), "q2 mismatch (f32)"

    # Larger, ragged batch exercises the multi-tile grid + batch padding.
    key, k_obs2, k_act2 = jax.random.split(key, 3)
    big = 700
    obs2 = jax.random.normal(k_obs2, (big, obs_dim), jnp.float32)
    act2 = jax.random.normal(k_act2, (big, action_dim), jnp.float32)
    s1, s2 = critic_reference(obs2, act2, params)

    p1, p2 = critic_forward(obs2, act2, params, weight_dtype=jnp.float32)
    jax.block_until_ready((p1, p2))
    assert jnp.allclose(p1, s1, atol=1e-4), "q1 mismatch (f32, big batch)"
    assert jnp.allclose(p2, s2, atol=1e-4), "q2 mismatch (f32, big batch)"

    b1, b2 = critic_forward(obs2, act2, params)          # default bf16 path
    jax.block_until_ready((b1, b2))
    assert jnp.allclose(b1, s1, atol=1e-1, rtol=1e-1), "q1 mismatch (bf16, big)"
    assert jnp.allclose(b2, s2, atol=1e-1, rtol=1e-1), "q2 mismatch (bf16, big)"

    print("KERNEL_OK")
</pallas_src>

<mosaic_0001>
module attributes {stable_mosaic.version = 11 : i64} {
  func.func @_fused_critic_kernel(%arg0: i32, %arg1: memref<8x8xf32, #tpu.memory_space<vmem>>, %arg2: memref<8x4xf32, #tpu.memory_space<vmem>>, %arg3: memref<176x128xbf16, #tpu.memory_space<vmem>>, %arg4: memref<2x8xf32, #tpu.memory_space<vmem>>, %arg5: memref<8x16xbf16, #tpu.memory_space<vmem>>) attributes {dimension_semantics = [#tpu.dimension_semantics<parallel>], iteration_bounds = array<i64: 1>, scalar_prefetch = 0 : i64, scratch_operands = 1 : i64, tpu.core_type = #tpu.core_type<tc>, window_params = [{transform_indices = @transform_0, window_bounds = array<i64: 8, 8>}, {transform_indices = @transform_1, window_bounds = array<i64: 8, 4>}, {pipeline_mode = #tpu.pipeline_mode<synchronous>, transform_indices = @transform_2, window_bounds = array<i64: 176, 128>}, {transform_indices = @transform_3, window_bounds = array<i64: 2, 8>}]} {
    %c0 = arith.constant 0 : index
    %c0_0 = arith.constant 0 : index
    %0 = vector.load %arg1[%c0, %c0_0] : memref<8x8xf32, #tpu.memory_space<vmem>>, vector<8x8xf32>
    %1 = arith.truncf %0 : vector<8x8xf32> to vector<8x8xbf16>
    %c0_1 = arith.constant 0 : index
    %c0_2 = arith.constant 0 : index
    %2 = vector.load %arg5[%c0_1, %c0_2] : memref<8x16xbf16, #tpu.memory_space<vmem>>, vector<8x8xbf16>
    tpu.vector_store %arg5[%c0_1, %c0_2], %1 {strides = array<i32>} : memref<8x16xbf16, #tpu.memory_space<vmem>>, vector<8x8xbf16>,
    %c0_3 = arith.constant 0 : index
    %c0_4 = arith.constant 0 : index
    %3 = vector.load %arg2[%c0_3, %c0_4] : memref<8x4xf32, #tpu.memory_space<vmem>>, vector<8x4xf32>
    %4 = arith.truncf %3 : vector<8x4xf32> to vector<8x4xbf16>
    %c0_5 = arith.constant 0 : index
    %c8 = arith.constant 8 : index
    %5 = vector.load %arg5[%c0_5, %c8] : memref<8x16xbf16, #tpu.memory_space<vmem>>, vector<8x4xbf16>
    tpu.vector_store %arg5[%c0_5, %c8], %4 {strides = array<i32>} : memref<8x16xbf16, #tpu.memory_space<vmem>>, vector<8x4xbf16>,
    %cst = arith.constant 0.000000e+00 : bf16
    %6 = vector.broadcast %cst : bf16 to vector<8x4xbf16>
    %c0_6 = arith.constant 0 : index
    %c12 = arith.constant 12 : index
    %7 = vector.load %arg5[%c0_6, %c12] : memref<8x16xbf16, #tpu.memory_space<vmem>>, vector<8x4xbf16>
    tpu.vector_store %arg5[%c0_6, %c12], %6 {strides = array<i32>} : memref<8x16xbf16, #tpu.memory_space<vmem>>, vector<8x4xbf16>,
    %c0_7 = arith.constant 0 : index
    %c0_8 = arith.constant 0 : index
    %8 = vector.load %arg5[%c0_7, %c0_8] : memref<8x16xbf16, #tpu.memory_space<vmem>>, vector<8x16xbf16>
    %c0_9 = arith.constant 0 : index
    %c0_10 = arith.constant 0 : index
    %9 = vector.load %arg3[%c0_9, %c0_10] : memref<176x128xbf16, #tpu.memory_space<vmem>>, vector<16x128xbf16>
    %c16 = arith.constant 16 : index
    %c0_11 = arith.constant 0 : index
    %10 = vector.load %arg3[%c16, %c0_11] : memref<176x128xbf16, #tpu.memory_space<vmem>>, vector<1x128xbf16>
    %11 = vector.shape_cast %10 : vector<1x128xbf16> to vector<128xbf16>
    %12 = arith.extf %11 : vector<128xbf16> to vector<128xf32>
    %cst_12 = arith.constant dense<0.000000e+00> : vector<8x128xf32>
    %13 = tpu.matmul %8, %9, %cst_12 {dimension_numbers = #tpu.dot_dimension_numbers<[1], [0], [0], [1], [0, 0, 1, 1], [], []>} : vector<8x16xbf16>, vector<16x128xbf16>, vector<8x128xf32> -> vector<8x128xf32>
    %14 = vector.shape_cast %12 : vector<128xf32> to vector<1x128xf32>
    %15 = vector.broadcast %14 : vector<1x128xf32> to vector<8x128xf32>
    %16 = arith.addf %13, %15 : vector<8x128xf32>
    %cst_13 = arith.constant 0.000000e+00 : f32
    %17 = vector.broadcast %cst_13 : f32 to vector<8x128xf32>
    %18 = arith.maximumf %16, %17 : vector<8x128xf32>
    %19 = arith.truncf %18 : vector<8x128xf32> to vector<8x128xbf16>
    %c24 = arith.constant 24 : index
    %c0_14 = arith.constant 0 : index
    %20 = vector.load %arg3[%c24, %c0_14] : memref<176x128xbf16, #tpu.memory_space<vmem>>, vector<128x128xbf16>
    %c152 = arith.constant 152 : index
    %c0_15 = arith.constant 0 : index
    %21 = vector.load %arg3[%c152, %c0_15] : memref<176x128xbf16, #tpu.memory_space<vmem>>, vector<1x128xbf16>
    %22 = vector.shape_cast %21 : vector<1x128xbf16> to vector<128xbf16>
    %23 = arith.extf %22 : vector<128xbf16> to vector<128xf32>
    %cst_16 = arith.constant dense<0.000000e+00> : vector<8x128xf32>
    %24 = tpu.matmul %19, %20, %cst_16 {dimension_numbers = #tpu.dot_dimension_numbers<[1], [0], [0], [1], [0, 0, 1, 1], [], []>} : vector<8x128xbf16>, vector<128x128xbf16>, vector<8x128xf32> -> vector<8x128xf32>
    %25 = vector.shape_cast %23 : vector<128xf32> to vector<1x128xf32>
    %26 = vector.broadcast %25 : vector<1x128xf32> to vector<8x128xf32>
    %27 = arith.addf %24, %26 : vector<8x128xf32>
    %cst_17 = arith.constant 0.000000e+00 : f32
    %28 = vector.broadcast %cst_17 : f32 to vector<8x128xf32>
    %29 = arith.maximumf %27, %28 : vector<8x128xf32>
    %30 = arith.truncf %29 : vector<8x128xf32> to vector<8x128xbf16>
    %c160 = arith.constant 160 : index
    %c0_18 = arith.constant 0 : index
    %31 = vector.load %arg3[%c160, %c0_18] : memref<176x128xbf16, #tpu.memory_space<vmem>>, vector<8x128xbf16>
    %cst_19 = arith.constant dense<0.000000e+00> : vector<8x8xf32>
    %32 = tpu.matmul %31, %30, %cst_19 {dimension_numbers = #tpu.dot_dimension_numbers<[1], [1], [0], [0], [0, 0, 1, 0], [], []>} : vector<8x128xbf16>, vector<8x128xbf16>, vector<8x8xf32> -> vector<8x8xf32>
    %c168 = arith.constant 168 : index
    %c0_20 = arith.constant 0 : index
    %33 = vector.load %arg3[%c168, %c0_20] : memref<176x128xbf16, #tpu.memory_space<vmem>>, vector<2x1xbf16>
    %34 = arith.extf %33 : vector<2x1xbf16> to vector<2x1xf32>
    %35 = vector.extract_strided_slice %32 {offsets = [0, 0], sizes = [2, 8], strides = [1, 1]} : vector<8x8xf32> to vector<2x8xf32>
    %36 = vector.broadcast %34 : vector<2x1xf32> to vector<2x8xf32>
    %37 = arith.addf %35, %36 : vector<2x8xf32>
    %c0_21 = arith.constant 0 : index
    %c0_22 = arith.constant 0 : index
    %38 = vector.load %arg4[%c0_21, %c0_22] : memref<2x8xf32, #tpu.memory_space<vmem>>, vector<2x8xf32>
    tpu.vector_store %arg4[%c0_21, %c0_22], %37 {strides = array<i32>} : memref<2x8xf32, #tpu.memory_space<vmem>>, vector<2x8xf32>,
    return
  }
  func.func @transform_0(%arg0: i32) -> (i32, i32) {
    %c0_i32 = arith.constant 0 : i32
    %c0_i32_0 = arith.constant 0 : i32
    return %arg0, %c0_i32 : i32, i32
  }
  func.func @transform_1(%arg0: i32) -> (i32, i32) {
    %c0_i32 = arith.constant 0 : i32
    %c0_i32_0 = arith.constant 0 : i32
    return %arg0, %c0_i32 : i32, i32
  }
  func.func @transform_2(%arg0: i32) -> (i32, i32) {
    %c0_i32 = arith.constant 0 : i32
    %c0_i32_0 = arith.constant 0 : i32
    %c0_i32_1 = arith.constant 0 : i32
    return %c0_i32, %c0_i32_0 : i32, i32
  }
  func.func @transform_3(%arg0: i32) -> (i32, i32) {
    %c0_i32 = arith.constant 0 : i32
    %c0_i32_0 = arith.constant 0 : i32
    return %c0_i32, %arg0 : i32, i32
  }
}

</mosaic_0001>

<llo_original>
// kernel: tpu_custom_call.1
$region0: #{tpu_custom_call.1}
  #allocation0 [shape = 'u32[]', space=smem, size = 0x4, offset = 0x4, fixed_abs, tag = 'smem constant byte address 0x4 - core index']
  #allocation1 [shape = 'u32[144,128]{1,0:T(1,128)}', space=vmem, size = 0x12000, scoped, tag = 'internal scratch']
  #allocation2 [shape = 'bf16[8,16]{1,0:T(8,128)(2,1)}', space=vmem, size = 0x800, scoped, tag = 'scratch operand']
  %s0 = inlined_call_operand.vmem [shape: f32[8,8], index: 0, kind: input, shape index: {}]
  %s1 = inlined_call_operand.vmem [shape: f32[8,4], index: 1, kind: input, shape index: {}]
  %s2 = inlined_call_operand.hbm [shape: bf16[176,128], index: 2, kind: input, shape index: {}]
  %s3 = inlined_call_operand.hbm [shape: f32[2,8], index: 3, kind: output, shape index: {}]
  %s4 = sld [smem:[#allocation0]]
  $region26: #{tpu_custom_call.1} parent=0
    _
  %s6 = ssub.s32 1, %s4
  %s7 = scalar_select 0, %s6, %s4
  $region1: #{tpu_custom_call.1} parent=0
    #allocation3 [shape = 'u8[45056]{0}', space=vmem, size = 0xb000, scoped, tag = 'input window, operand 2, single buffered']
    #allocation4 [shape = 's32[1]{0}', space=sflag, size = 0x4, scoped, tag = 'scoped memory for tpu_custom_call.1']
    #allocation5 [shape = 's32[1]{0}', space=sflag, size = 0x4, scoped, tag = 'scoped memory for tpu_custom_call.1']
    #allocation6 [shape = 'u8[1024]{0}', space=vmem, size = 0x400, scoped, tag = 'output window, operand 0, single buffered']
    %8 = vsyncpa [#allocation4], 0
    %9 = vsyncpa [#allocation5], 0
    // Predicated region
    $region2: #{tpu_custom_call.1} parent=1 // pred_check
      _
    $region3: #{tpu_custom_call.1} parent=1 // pred_check_branch
      %11 = sbr.rel (0) target = $region5
    $region4: #{tpu_custom_call.1} parent=1 // pred_region
      _
    $region5: #{tpu_custom_call.1} parent=1 // pred_fallthru
      _
    // Predicated region
    $region6: #{tpu_custom_call.1} parent=1 // pred_check
      _
    $region7: #{tpu_custom_call.1} parent=1 // pred_check_branch
      %13 = sbr.rel (0) target = $region9
    $region8: #{tpu_custom_call.1} parent=1 // pred_region
      _
    $region9: #{tpu_custom_call.1} parent=1 // pred_fallthru
      _
    // Predicated region
    $region10: #{tpu_custom_call.1} parent=1 // pred_check
      _
    $region11: #{tpu_custom_call.1} parent=1 // pred_check_branch
      %15 = sbr.rel (0) target = $region13
    $region12: #{tpu_custom_call.1} parent=1 // pred_region
      %s17 = ssub.s32 1408, 1408
      %18 = vsyncadd [#allocation4], %s17
      %s19 = sshll.u32 [#allocation3], 4
      %s20 = int_to_ptr.vmem [resolvable:$true] %s19
      %25 = dma.hbm_to_vmem [thread:$0]  %s2, 1408, %s20, [#allocation4], 64, 64, 4
    $region13: #{tpu_custom_call.1} parent=1 // pred_fallthru
      _
    // Predicated region
    $region14: #{tpu_custom_call.1} parent=1 // pred_check
      _
    $region15: #{tpu_custom_call.1} parent=1 // pred_check_branch
      %27 = sbr.rel (0) target = $region17
    $region16: #{tpu_custom_call.1} parent=1 // pred_region
      %28 = dma.done [#allocation4], 1408
    $region17: #{tpu_custom_call.1} parent=1 // pred_fallthru
      _
    %v30 = vld [vmem:[%s0] sm:$0xff]
    %v31 = vpack.c.bf16 %v30, %v30
    %vm32 = vcmask 60416
    %33 = vst.msk [vmem:[#allocation2] sm:$0xf] %vm32, %v31
    %v34 = vld [vmem:[%s1] sm:$0xff]
    %v35 = vpack.c.bf16 %v34, %v34
    %v37 = vunpack.c.l.b16 %v35
    %v38 = vpack.c.b16 %v37, %v37
    %39 = vrot.lane.b32.xlu0 %v38, 8
    %v40 = vpop.permute.xlu0 %39
    %vm42 = vcmask 93248
    %43 = vst.msk [vmem:[#allocation2] sm:$0xf] %vm42, %v40
    %vm44 = vcmask 126048
    %45 = vst.msk [vmem:[#allocation2] sm:$0xf] %vm44, 0
    %v46 = vld [vmem:[#allocation2] sm:$0xf]
    %v47 = vld [vmem:[#allocation3] sm:$0xf]
    %v48 = vld [vmem:[#allocation3 + $0x4] sm:$0xf]
    %v49 = vld [vmem:[#allocation3 + $0x8] sm:$0x1]
    %v50 = vunpack.c.l.bf16 %v49
    %v51 = vlaneseq
    %v52 = vshrl.u32 %v51, 7
    %v53 = vsub.s32 0, %v52
    %v54 = vrot.slane %v50, %v53
    %v57 = vunpack.c.l.b16 %v47
    %v58 = vunpack.c.l.b16 %v48
    %v59 = vpack.c.b16 %v58, %v57
    %vm61 = vcmask 130048
    %v63 = vsel %vm61, %v46, 0
    %65 = vmatprep.subr.bf16.mxu0 0
    %66 = vmatpush1.bf16.msra.mxu0 %v59
    %67 = vmatprep.subr.bf16.mxu0 0
    %68 = vmatpush1.bf16.msra.mxu0 0
    %69 = vmatprep.subr.bf16.mxu0 0
    %70 = vmatpush1.bf16.msra.mxu0 0
    %71 = vmatprep.subr.bf16.mxu0 0
    %72 = vmatpush1.bf16.msra.mxu0 0
    %73 = vmatprep.subr.bf16.mxu0 0
    %74 = vmatpush1.bf16.msra.mxu0 0
    %75 = vmatprep.subr.bf16.mxu0 0
    %76 = vmatpush1.bf16.msra.mxu0 0
    %77 = vmatprep.subr.bf16.mxu0 0
    %78 = vmatpush1.bf16.msra.mxu0 0
    %79 = vmatprep.subr.bf16.mxu0 0
    %80 = vmatpush1.bf16.msra.mxu0 0
    %81 = vmatprep.subr.bf16.mxu0 0
    %82 = vmatpush1.bf16.msra.mxu0 0
    %83 = vmatprep.subr.bf16.mxu0 0
    %84 = vmatpush1.bf16.msra.mxu0 0
    %85 = vmatprep.subr.bf16.mxu0 0
    %86 = vmatpush1.bf16.msra.mxu0 0
    %87 = vmatprep.subr.bf16.mxu0 0
    %88 = vmatpush1.bf16.msra.mxu0 0
    %89 = vmatprep.subr.bf16.mxu0 0
    %90 = vmatpush1.bf16.msra.mxu0 0
    %91 = vmatprep.subr.bf16.mxu0 0
    %92 = vmatpush1.bf16.msra.mxu0 0
    %93 = vmatprep.subr.bf16.mxu0 0
    %94 = vmatpush1.bf16.msra.mxu0 0
    %95 = vmatprep.subr.bf16.mxu0 0
    %96 = vmatpush1.bf16.msra.mxu0 0
    %97 = vmatprep.mubr.bf16.mxu0 0
    %98 = vmatmul.mubr.bf16.gmra.mrb[0].mxu0 %v63
    %v99 = vpop.f32.mrb[0].mxu0
    %v100 = vadd.f32 %v54, %v99
    %v101 = vpop.f32.mrb[0].mxu0
    %v102 = vpop.f32.mrb[0].mxu0
    %v103 = vpop.f32.mrb[0].mxu0
    %104 = vdwg.mxu0
    %v105 = vmax.f32 %v100, 0.0
    %v106 = vpack.c.bf16 %v105, %v105
    %v107 = vld [vmem:[#allocation3 + $0xc] sm:$0xf]
    %v108 = vld [vmem:[#allocation3 + $0x10] sm:$0xf]
    %v109 = vld [vmem:[#allocation3 + $0x14] sm:$0xf]
    %v110 = vld [vmem:[#allocation3 + $0x18] sm:$0xf]
    %v111 = vld [vmem:[#allocation3 + $0x1c] sm:$0xf]
    %v112 = vld [vmem:[#allocation3 + $0x20] sm:$0xf]
    %v113 = vld [vmem:[#allocation3 + $0x24] sm:$0xf]
    %v114 = vld [vmem:[#allocation3 + $0x28] sm:$0xf]
    %v115 = vld [vmem:[#allocation3 + $0x2c] sm:$0xf]
    %v116 = vld [vmem:[#allocation3 + $0x30] sm:$0xf]
    %v117 = vld [vmem:[#allocation3 + $0x34] sm:$0xf]
    %v118 = vld [vmem:[#allocation3 + $0x38] sm:$0xf]
    %v119 = vld [vmem:[#allocation3 + $0x3c] sm:$0xf]
    %v120 = vld [vmem:[#allocation3 + $0x40] sm:$0xf]
    %v121 = vld [vmem:[#allocation3 + $0x44] sm:$0xf]
    %v122 = vld [vmem:[#allocation3 + $0x48] sm:$0xf]
    %v123 = vld [vmem:[#allocation3 + $0x4c] sm:$0x1]
    %v124 = vunpack.c.l.bf16 %v123
    %v125 = vlaneseq
    %v126 = vshrl.u32 %v125, 7
    %v127 = vsub.s32 0, %v126
    %v128 = vrot.slane %v124, %v127
    %v145 = vunpack.c.l.b16 %v107
    %v146 = vunpack.c.l.b16 %v108
    %v147 = vunpack.c.l.b16 %v109
    %v148 = vunpack.c.l.b16 %v110
    %v149 = vunpack.c.l.b16 %v111
    %v150 = vunpack.c.l.b16 %v112
    %v151 = vunpack.c.l.b16 %v113
    %v152 = vunpack.c.l.b16 %v114
    %v153 = vunpack.c.l.b16 %v115
    %v154 = vunpack.c.l.b16 %v116
    %v155 = vunpack.c.l.b16 %v117
    %v156 = vunpack.c.l.b16 %v118
    %v157 = vunpack.c.l.b16 %v119
    %v158 = vunpack.c.l.b16 %v120
    %v159 = vunpack.c.l.b16 %v121
    %v160 = vunpack.c.l.b16 %v122
    %v161 = vpack.c.b16 %v146, %v145
    %v162 = vpack.c.b16 %v148, %v147
    %v163 = vpack.c.b16 %v150, %v149
    %v164 = vpack.c.b16 %v152, %v151
    %v165 = vpack.c.b16 %v154, %v153
    %v166 = vpack.c.b16 %v156, %v155
    %v167 = vpack.c.b16 %v158, %v157
    %v168 = vpack.c.b16 %v160, %v159
    %177 = vmatprep.subr.bf16.mxu0 0
    %178 = vmatpush1.bf16.msra.mxu0 %v161
    %179 = vmatprep.subr.bf16.mxu0 0
    %180 = vmatpush1.bf16.msra.mxu0 %v162
    %181 = vmatprep.subr.bf16.mxu0 0
    %182 = vmatpush1.bf16.msra.mxu0 %v163
    %183 = vmatprep.subr.bf16.mxu0 0
    %184 = vmatpush1.bf16.msra.mxu0 %v164
    %185 = vmatprep.subr.bf16.mxu0 0
    %186 = vmatpush1.bf16.msra.mxu0 %v165
    %187 = vmatprep.subr.bf16.mxu0 0
    %188 = vmatpush1.bf16.msra.mxu0 %v166
    %189 = vmatprep.subr.bf16.mxu0 0
    %190 = vmatpush1.bf16.msra.mxu0 %v167
    %191 = vmatprep.subr.bf16.mxu0 0
    %192 = vmatpush1.bf16.msra.mxu0 %v168
    %193 = vmatprep.subr.bf16.mxu0 0
    %194 = vmatpush1.bf16.msra.mxu0 0
    %195 = vmatprep.subr.bf16.mxu0 0
    %196 = vmatpush1.bf16.msra.mxu0 0
    %197 = vmatprep.subr.bf16.mxu0 0
    %198 = vmatpush1.bf16.msra.mxu0 0
    %199 = vmatprep.subr.bf16.mxu0 0
    %200 = vmatpush1.bf16.msra.mxu0 0
    %201 = vmatprep.subr.bf16.mxu0 0
    %202 = vmatpush1.bf16.msra.mxu0 0
    %203 = vmatprep.subr.bf16.mxu0 0
    %204 = vmatpush1.bf16.msra.mxu0 0
    %205 = vmatprep.subr.bf16.mxu0 0
    %206 = vmatpush1.bf16.msra.mxu0 0
    %207 = vmatprep.subr.bf16.mxu0 0
    %208 = vmatpush1.bf16.msra.mxu0 0
    %209 = vmatprep.mubr.bf16.mxu0 0
    %210 = vmatmul.mubr.bf16.gmra.mrb[0].mxu0 %v106
    %v211 = vpop.f32.mrb[0].mxu0
    %v212 = vadd.f32 %v128, %v211
    %v213 = vpop.f32.mrb[0].mxu0
    %v214 = vpop.f32.mrb[0].mxu0
    %v215 = vpop.f32.mrb[0].mxu0
    %216 = vdwg.mxu0
    %v217 = vmax.f32 %v212, 0.0
    %v218 = vpack.c.bf16 %v217, %v217
    %v219 = vld [vmem:[#allocation3 + $0x50] sm:$0xf]
    %220 = vmatprep.subr.bf16.mxu0 0
    %221 = vmatpush1.bf16.xpose.msra.mxu0 %v218
    %222 = vmatprep.subr.bf16.mxu0 0
    %223 = vmatpush1.bf16.xpose.msra.mxu0 0
    %224 = vmatprep.subr.bf16.mxu0 0
    %225 = vmatpush1.bf16.xpose.msra.mxu0 0
    %226 = vmatprep.subr.bf16.mxu0 0
    %227 = vmatpush1.bf16.xpose.msra.mxu0 0
    %228 = vmatprep.subr.bf16.mxu0 0
    %229 = vmatpush1.bf16.xpose.msra.mxu0 0
    %230 = vmatprep.subr.bf16.mxu0 0
    %231 = vmatpush1.bf16.xpose.msra.mxu0 0
    %232 = vmatprep.subr.bf16.mxu0 0
    %233 = vmatpush1.bf16.xpose.msra.mxu0 0
    %234 = vmatprep.subr.bf16.mxu0 0
    %235 = vmatpush1.bf16.xpose.msra.mxu0 0
    %236 = vmatprep.subr.bf16.mxu0 0
    %237 = vmatpush1.bf16.xpose.msra.mxu0 0
    %238 = vmatprep.subr.bf16.mxu0 0
    %239 = vmatpush1.bf16.xpose.msra.mxu0 0
    %240 = vmatprep.subr.bf16.mxu0 0
    %241 = vmatpush1.bf16.xpose.msra.mxu0 0
    %242 = vmatprep.subr.bf16.mxu0 0
    %243 = vmatpush1.bf16.xpose.msra.mxu0 0
    %244 = vmatprep.subr.bf16.mxu0 0
    %245 = vmatpush1.bf16.xpose.msra.mxu0 0
    %246 = vmatprep.subr.bf16.mxu0 0
    %247 = vmatpush1.bf16.xpose.msra.mxu0 0
    %248 = vmatprep.subr.bf16.mxu0 0
    %249 = vmatpush1.bf16.xpose.msra.mxu0 0
    %250 = vmatprep.subr.bf16.mxu0 0
    %251 = vmatpush1.bf16.xpose.msra.mxu0 0
    %252 = vmatprep.mubr.bf16.mxu0 0
    %253 = vmatmul.mubr.bf16.gmra.mrb[0].mxu0 %v219
    %v254 = vpop.f32.mrb[0].mxu0
    %v255 = vadd.f32 0.0, %v254
    %v256 = vpop.f32.mrb[0].mxu0
    %v257 = vpop.f32.mrb[0].mxu0
    %v258 = vpop.f32.mrb[0].mxu0
    %259 = vdwg.mxu0
    %v260 = vld [vmem:[#allocation3 + $0x54] sm:$0x1]
    %v261 = vunpack.c.l.bf16 %v260
    %263 = vset.pattern.permute.xlu0 0
    %264 = vperm.xlu0 %263, %v261
    %v265 = vpop.permute.xlu0 %264
    %v267 = vadd.f32 %v255, %v265
    %vm268 = vcmask 58368
    %269 = vst.msk [vmem:[#allocation6] sm:$0x3] %vm268, %v267
    // Predicated region
    $region18: #{tpu_custom_call.1} parent=1 // pred_check
      _
    $region19: #{tpu_custom_call.1} parent=1 // pred_check_branch
      %271 = sbr.rel (0) target = $region21
    $region20: #{tpu_custom_call.1} parent=1 // pred_region
      %s273 = ssub.s32 32, 32
      %274 = vsyncadd [#allocation5], %s273
      %s276 = sshll.u32 [#allocation6], 4
      %s277 = int_to_ptr.vmem [resolvable:$true] %s276
      %279 = dma.vmem_to_hbm [thread:$0]  %s277, 32, %s3, [#allocation5]
    $region21: #{tpu_custom_call.1} parent=1 // pred_fallthru
      _
    // Predicated region
    $region22: #{tpu_custom_call.1} parent=1 // pred_check
      _
    $region23: #{tpu_custom_call.1} parent=1 // pred_check_branch
      %281 = sbr.rel (0) target = $region25
    $region24: #{tpu_custom_call.1} parent=1 // pred_region
      %282 = dma.done [#allocation5], 32
    $region25: #{tpu_custom_call.1} parent=1 // pred_fallthru
      _
    %283 = vsyncpa [#allocation4], 1
    %284 = vsyncpa [#allocation5], 1

</llo_original>
